<compile_context>
chip_gen: v7x
topology: tpu7x:2x2x1
jax: 0.10.0
libtpu: 0.0.40
codegen_flags: <defaults>
</compile_context>

<pallas_src>
import math

import jax
import jax.numpy as jnp
from jax.experimental import pallas as pl
from jax.experimental.pallas import tpu as pltpu


def _round_up(a: int, b: int) -> int:
    return (a + b - 1) // b * b


def ffn_kernel(x_ref, w1_ref, b1_ref, w2_ref, b2_ref, o_ref):
    """Fused FFN tile: out = x + relu(x @ W1 + b1) @ W2 + b2.

    x_ref : (TR, Dk) f32 lane-dense token slab (Dk = p * D, p tokens per row)
    w1_ref: (Dk, Fk) bf16  block-diagonal kron(I_p, W1)
    b1_ref: (1, Fk)  f32
    w2_ref: (Fk, Dk) bf16  block-diagonal kron(I_p, W2)
    b2_ref: (1, Dk)  f32
    o_ref : (TR, Dk) f32
    """
    x = x_ref[...]                                       # f32, also the residual
    # bf16 MXU operands (native rate on v5e/v6e/v7x); accumulate in f32.
    h = jnp.dot(x.astype(jnp.bfloat16), w1_ref[...],
                preferred_element_type=jnp.float32) + b1_ref[...]
    h = jnp.maximum(h, 0.0)                              # ReLU; ffn_drop=0.0 -> dropout no-op
    y = jnp.dot(h.astype(jnp.bfloat16), w2_ref[...],
                preferred_element_type=jnp.float32)
    # add_identity=True, identity=None  =>  out = x + ffn(x); b2 folded in here.
    o_ref[...] = (x + y + b2_ref[...]).astype(o_ref.dtype)


def make_ffn_pallas(w1, b1, w2, b2, *, tile_rows=1024):
    """Pack/cast the FFN parameters ONCE and return an `x -> ffn(x)` closure."""
    D, F = w1.shape
    assert w2.shape == (F, D) and b1.shape == (F,) and b2.shape == (D,)

    # ---- lane-dense layout selection (host side, hoisted out of per-call path) ----
    if D < 128 and 128 % D == 0:
        p, Dp = 128 // D, D            # pack p tokens per 128-wide row
    elif D < 128:
        p, Dp = 1, 128                 # zero-pad feature dim -> fully lane-dense stores
    else:
        p, Dp = 1, D

    w1p, w2p, b2p = w1, w2, b2
    if Dp != D:
        w1p = jnp.pad(w1, ((0, Dp - D), (0, 0)))
        w2p = jnp.pad(w2, ((0, 0), (0, Dp - D)))
        b2p = jnp.pad(b2, (0, Dp - D))

    if p > 1:
        eye = jnp.eye(p, dtype=w1p.dtype)
        w1k = jnp.kron(eye, w1p)                         # (p*Dp, p*F)  block diagonal
        w2k = jnp.kron(eye, w2p)                         # (p*F, p*Dp)  block diagonal
        b1k = jnp.tile(b1, p).reshape(1, p * F)
        b2k = jnp.tile(b2p, p).reshape(1, p * Dp)
    else:
        w1k, w2k = w1p, w2p
        b1k, b2k = b1.reshape(1, F), b2p.reshape(1, Dp)

    # bf16 matmul operands; biases / residual stay f32.
    w1k = w1k.astype(jnp.bfloat16)
    w2k = w2k.astype(jnp.bfloat16)
    b1k = b1k.astype(jnp.float32)
    b2k = b2k.astype(jnp.float32)

    Dk, Fk = Dp * p, F * p

    # Cap the row tile so the (TR, Fk) f32 hidden activation stays <= ~4 MiB,
    # leaving headroom for double-buffered I/O under v7x's 64 MiB VMEM.
    cap = max(64, (4 * 1024 * 1024) // (Fk * 4))
    tile_rows = max(8, (min(tile_rows, cap) // 8) * 8)

    def ffn(x):
        orig_shape = x.shape
        assert orig_shape[-1] == D
        N = math.prod(orig_shape[:-1])
        xf = x.reshape(N, D).astype(jnp.float32)
        if Dp != D:
            xf = jnp.pad(xf, ((0, 0), (0, Dp - D)))

        # Fixed-size tiles for every N: pad the packed rows up to a tile
        # multiple on the host (no divisor search, no unpipelined fallback).
        rows = -(-N // p)
        tr = min(tile_rows, _round_up(rows, 8))
        rows_pad = _round_up(rows, tr)
        n_pad = rows_pad * p
        if n_pad != N:
            xf = jnp.pad(xf, ((0, n_pad - N), (0, 0)))
        x2 = xf.reshape(rows_pad, Dk)                    # free row-major reshape

        grid = (rows_pad // tr,)
        out2 = pl.pallas_call(
            ffn_kernel,
            out_shape=jax.ShapeDtypeStruct((rows_pad, Dk), jnp.float32),
            grid_spec=pltpu.PrefetchScalarGridSpec(
                num_scalar_prefetch=0,
                grid=grid,
                in_specs=[
                    pl.BlockSpec((tr, Dk), lambda i: (i, 0)),    # token slab
                    # Constant index_maps: weights/biases are DMA'd once and
                    # stay resident in VMEM across all grid steps.
                    pl.BlockSpec((Dk, Fk), lambda i: (0, 0)),    # W1 (bf16)
                    pl.BlockSpec((1, Fk), lambda i: (0, 0)),     # b1
                    pl.BlockSpec((Fk, Dk), lambda i: (0, 0)),    # W2 (bf16)
                    pl.BlockSpec((1, Dk), lambda i: (0, 0)),     # b2
                ],
                out_specs=pl.BlockSpec((tr, Dk), lambda i: (i, 0)),
            ),
            compiler_params=pltpu.CompilerParams(
                dimension_semantics=("parallel",),       # megacore / v7x-shardable rows
                vmem_limit_bytes=48 * 1024 * 1024,       # safe on v5e/v6e (128 MiB) and v7x (64 MiB)
            ),
        )(x2, w1k, b1k, w2k, b2k)

        out = out2.reshape(n_pad, Dp)[:N, :D].astype(x.dtype)
        return out.reshape(orig_shape)

    return ffn


def ffn_pallas(x, w1, b1, w2, b2, *, tile_rows=1024):
    """One-off convenience wrapper (prefer make_ffn_pallas to hoist weight prep)."""
    return make_ffn_pallas(w1, b1, w2, b2, tile_rows=tile_rows)(x)


def ffn_reference(x, w1, b1, w2, b2):
    # Emulates the kernel's bf16 matmul operands (f32 accumulate, f32 residual).
    h = jnp.dot(x.astype(jnp.bfloat16), w1.astype(jnp.bfloat16),
                preferred_element_type=jnp.float32) + b1
    h = jnp.maximum(h, 0.0)
    y = jnp.dot(h.astype(jnp.bfloat16), w2.astype(jnp.bfloat16),
                preferred_element_type=jnp.float32)
    return x + y + b2


if __name__ == "__main__":
    # Small, module-consistent shapes: embed_dims=32, feedforward_channels=64,
    # num_fcs=2 (default structure), batch=2, seq=8.
    embed_dims = 32
    feedforward_channels = 64
    B, S = 2, 8

    key = jax.random.PRNGKey(0)
    kx, kw1, kb1, kw2, kb2 = jax.random.split(key, 5)

    x = jax.random.normal(kx, (B, S, embed_dims), dtype=jnp.float32)
    # Synthetic deterministic parameters; Linear weights stored as (in, out)
    # so the kernel computes x @ W.
    w1 = jax.random.normal(kw1, (embed_dims, feedforward_channels), jnp.float32) * 0.05
    b1 = jax.random.normal(kb1, (feedforward_channels,), jnp.float32) * 0.05
    w2 = jax.random.normal(kw2, (feedforward_channels, embed_dims), jnp.float32) * 0.05
    b2 = jax.random.normal(kb2, (embed_dims,), jnp.float32) * 0.05

    ffn = make_ffn_pallas(w1, b1, w2, b2)        # weight packing hoisted (done once)

    out = jax.block_until_ready(ffn(x))
    ref = ffn_reference(x, w1, b1, w2, b2)
    assert jnp.allclose(out, ref, atol=2e-3, rtol=2e-3), "mismatch vs reference"

    # Awkward token count (N=15, not a multiple of the 4-token packing factor)
    # exercises the host-padding / fixed-tile path.
    x_odd = jax.random.normal(kx, (3, 5, embed_dims), dtype=jnp.float32)
    out_odd = jax.block_until_ready(ffn(x_odd))
    ref_odd = ffn_reference(x_odd, w1, b1, w2, b2)
    assert jnp.allclose(out_odd, ref_odd, atol=2e-3, rtol=2e-3), "mismatch (padded path)"

    # TODO(synk): non-zero ffn_drop (training-mode dropout) and num_fcs > 2 are
    # not implemented; at module defaults (ffn_drop=0.0, num_fcs=2) this matches.
    print("KERNEL_OK")
</pallas_src>

<mosaic_0001>
module attributes {stable_mosaic.version = 11 : i64} {
  func.func @ffn_kernel(%arg0: i32, %arg1: memref<8x128xf32, #tpu.memory_space<vmem>>, %arg2: memref<128x256xbf16, #tpu.memory_space<vmem>>, %arg3: memref<1x256xf32, #tpu.memory_space<vmem>>, %arg4: memref<256x128xbf16, #tpu.memory_space<vmem>>, %arg5: memref<1x128xf32, #tpu.memory_space<vmem>>, %arg6: memref<8x128xf32, #tpu.memory_space<vmem>>) attributes {dimension_semantics = [#tpu.dimension_semantics<parallel>], iteration_bounds = array<i64: 1>, scalar_prefetch = 0 : i64, scratch_operands = 0 : i64, tpu.core_type = #tpu.core_type<tc>, window_params = [{transform_indices = @transform_0, window_bounds = array<i64: 8, 128>}, {pipeline_mode = #tpu.pipeline_mode<synchronous>, transform_indices = @transform_1, window_bounds = array<i64: 128, 256>}, {pipeline_mode = #tpu.pipeline_mode<synchronous>, transform_indices = @transform_2, window_bounds = array<i64: 1, 256>}, {pipeline_mode = #tpu.pipeline_mode<synchronous>, transform_indices = @transform_3, window_bounds = array<i64: 256, 128>}, {pipeline_mode = #tpu.pipeline_mode<synchronous>, transform_indices = @transform_4, window_bounds = array<i64: 1, 128>}, {transform_indices = @transform_5, window_bounds = array<i64: 8, 128>}]} {
    %c0 = arith.constant 0 : index
    %c0_0 = arith.constant 0 : index
    %0 = vector.load %arg1[%c0, %c0_0] : memref<8x128xf32, #tpu.memory_space<vmem>>, vector<8x128xf32>
    %1 = arith.truncf %0 : vector<8x128xf32> to vector<8x128xbf16>
    %c0_1 = arith.constant 0 : index
    %c0_2 = arith.constant 0 : index
    %2 = vector.load %arg2[%c0_1, %c0_2] : memref<128x256xbf16, #tpu.memory_space<vmem>>, vector<128x256xbf16>
    %cst = arith.constant dense<0.000000e+00> : vector<8x256xf32>
    %3 = tpu.matmul %1, %2, %cst {dimension_numbers = #tpu.dot_dimension_numbers<[1], [0], [0], [1], [0, 0, 1, 1], [], []>} : vector<8x128xbf16>, vector<128x256xbf16>, vector<8x256xf32> -> vector<8x256xf32>
    %c0_3 = arith.constant 0 : index
    %c0_4 = arith.constant 0 : index
    %4 = vector.load %arg3[%c0_3, %c0_4] : memref<1x256xf32, #tpu.memory_space<vmem>>, vector<1x256xf32>
    %5 = vector.broadcast %4 : vector<1x256xf32> to vector<8x256xf32>
    %6 = arith.addf %3, %5 : vector<8x256xf32>
    %cst_5 = arith.constant 0.000000e+00 : f32
    %7 = vector.broadcast %cst_5 : f32 to vector<8x256xf32>
    %8 = arith.maximumf %6, %7 : vector<8x256xf32>
    %9 = arith.truncf %8 : vector<8x256xf32> to vector<8x256xbf16>
    %c0_6 = arith.constant 0 : index
    %c0_7 = arith.constant 0 : index
    %10 = vector.load %arg4[%c0_6, %c0_7] : memref<256x128xbf16, #tpu.memory_space<vmem>>, vector<256x128xbf16>
    %cst_8 = arith.constant dense<0.000000e+00> : vector<8x128xf32>
    %11 = tpu.matmul %9, %10, %cst_8 {dimension_numbers = #tpu.dot_dimension_numbers<[1], [0], [0], [1], [0, 0, 1, 1], [], []>} : vector<8x256xbf16>, vector<256x128xbf16>, vector<8x128xf32> -> vector<8x128xf32>
    %12 = arith.addf %0, %11 : vector<8x128xf32>
    %c0_9 = arith.constant 0 : index
    %c0_10 = arith.constant 0 : index
    %13 = vector.load %arg5[%c0_9, %c0_10] : memref<1x128xf32, #tpu.memory_space<vmem>>, vector<1x128xf32>
    %14 = vector.broadcast %13 : vector<1x128xf32> to vector<8x128xf32>
    %15 = arith.addf %12, %14 : vector<8x128xf32>
    %c0_11 = arith.constant 0 : index
    %c0_12 = arith.constant 0 : index
    %16 = vector.load %arg6[%c0_11, %c0_12] : memref<8x128xf32, #tpu.memory_space<vmem>>, vector<8x128xf32>
    tpu.vector_store %arg6[%c0_11, %c0_12], %15 {strides = array<i32>} : memref<8x128xf32, #tpu.memory_space<vmem>>, vector<8x128xf32>,
    return
  }
  func.func @transform_0(%arg0: i32) -> (i32, i32) {
    %c0_i32 = arith.constant 0 : i32
    %c0_i32_0 = arith.constant 0 : i32
    return %arg0, %c0_i32 : i32, i32
  }
  func.func @transform_1(%arg0: i32) -> (i32, i32) {
    %c0_i32 = arith.constant 0 : i32
    %c0_i32_0 = arith.constant 0 : i32
    %c0_i32_1 = arith.constant 0 : i32
    return %c0_i32, %c0_i32_0 : i32, i32
  }
  func.func @transform_2(%arg0: i32) -> (i32, i32) {
    %c0_i32 = arith.constant 0 : i32
    %c0_i32_0 = arith.constant 0 : i32
    %c0_i32_1 = arith.constant 0 : i32
    return %c0_i32, %c0_i32_0 : i32, i32
  }
  func.func @transform_3(%arg0: i32) -> (i32, i32) {
    %c0_i32 = arith.constant 0 : i32
    %c0_i32_0 = arith.constant 0 : i32
    %c0_i32_1 = arith.constant 0 : i32
    return %c0_i32, %c0_i32_0 : i32, i32
  }
  func.func @transform_4(%arg0: i32) -> (i32, i32) {
    %c0_i32 = arith.constant 0 : i32
    %c0_i32_0 = arith.constant 0 : i32
    %c0_i32_1 = arith.constant 0 : i32
    return %c0_i32, %c0_i32_0 : i32, i32
  }
  func.func @transform_5(%arg0: i32) -> (i32, i32) {
    %c0_i32 = arith.constant 0 : i32
    %c0_i32_0 = arith.constant 0 : i32
    return %arg0, %c0_i32 : i32, i32
  }
}

</mosaic_0001>

<llo_original>
// kernel: tpu_custom_call.1
$region0: #{tpu_custom_call.1}
  #allocation0 [shape = 'u32[]', space=smem, size = 0x4, offset = 0x4, fixed_abs, tag = 'smem constant byte address 0x4 - core index']
  #allocation1 [shape = 'u32[144,128]{1,0:T(1,128)}', space=vmem, size = 0x12000, scoped, tag = 'internal scratch']
  %s0 = inlined_call_operand.hbm [shape: f32[8,128], index: 0, kind: input, shape index: {}]
  %s1 = inlined_call_operand.hbm [shape: bf16[128,256], index: 1, kind: input, shape index: {}]
  %s2 = inlined_call_operand.vmem [shape: f32[1,256], index: 2, kind: input, shape index: {}]
  %s3 = inlined_call_operand.hbm [shape: bf16[256,128], index: 3, kind: input, shape index: {}]
  %s4 = inlined_call_operand.vmem [shape: f32[1,128], index: 4, kind: input, shape index: {}]
  %s5 = inlined_call_operand.hbm [shape: f32[8,128], index: 5, kind: output, shape index: {}]
  %s6 = sld [smem:[#allocation0]]
  $region42: #{tpu_custom_call.1} parent=0
    _
  %s8 = ssub.s32 1, %s6
  %s9 = scalar_select 0, %s8, %s6
  $region1: #{tpu_custom_call.1} parent=0
    #allocation2 [shape = 'u8[4096]{0}', space=vmem, size = 0x1000, scoped, tag = 'input window, operand 0, single buffered']
    #allocation3 [shape = 's32[1]{0}', space=sflag, size = 0x4, scoped, tag = 'scoped memory for tpu_custom_call.1']
    #allocation4 [shape = 's32[1]{0}', space=sflag, size = 0x4, scoped, tag = 'scoped memory for tpu_custom_call.1']
    #allocation5 [shape = 'u8[65536]{0}', space=vmem, size = 0x10000, scoped, tag = 'input window, operand 1, single buffered']
    #allocation6 [shape = 's32[1]{0}', space=sflag, size = 0x4, scoped, tag = 'scoped memory for tpu_custom_call.1']
    #allocation7 [shape = 'u8[65536]{0}', space=vmem, size = 0x10000, scoped, tag = 'input window, operand 3, single buffered']
    #allocation8 [shape = 'u8[4096]{0}', space=vmem, size = 0x1000, scoped, tag = 'output window, operand 0, single buffered']
    %10 = vsyncpa [#allocation3], 0
    %11 = vsyncpa [#allocation6], 0
    %12 = vsyncpa [#allocation4], 0
    // Predicated region
    $region2: #{tpu_custom_call.1} parent=1 // pred_check
      _
    $region3: #{tpu_custom_call.1} parent=1 // pred_check_branch
      %14 = sbr.rel (0) target = $region5
    $region4: #{tpu_custom_call.1} parent=1 // pred_region
      %s16 = ssub.s32 128, 128
      %17 = vsyncadd [#allocation3], %s16
      %s19 = sshll.u32 [#allocation2], 4
      %s20 = int_to_ptr.vmem [resolvable:$true] %s19
      %22 = dma.hbm_to_vmem [thread:$0]  %s0, 128, %s20, [#allocation3]
    $region5: #{tpu_custom_call.1} parent=1 // pred_fallthru
      _
    // Predicated region
    $region6: #{tpu_custom_call.1} parent=1 // pred_check
      _
    $region7: #{tpu_custom_call.1} parent=1 // pred_check_branch
      %24 = sbr.rel (0) target = $region9
    $region8: #{tpu_custom_call.1} parent=1 // pred_region
      %s26 = ssub.s32 2048, 2048
      %27 = vsyncadd [#allocation6], %s26
      %s28 = sshll.u32 [#allocation5], 4
      %s29 = int_to_ptr.vmem [resolvable:$true] %s28
      %34 = dma.hbm_to_vmem [thread:$0]  %s1, 2048, %s29, [#allocation6], 128, 128, 8
    $region9: #{tpu_custom_call.1} parent=1 // pred_fallthru
      _
    // Predicated region
    $region10: #{tpu_custom_call.1} parent=1 // pred_check
      _
    $region11: #{tpu_custom_call.1} parent=1 // pred_check_branch
      %36 = sbr.rel (0) target = $region13
    $region12: #{tpu_custom_call.1} parent=1 // pred_region
      _
    $region13: #{tpu_custom_call.1} parent=1 // pred_fallthru
      _
    // Predicated region
    $region14: #{tpu_custom_call.1} parent=1 // pred_check
      _
    $region15: #{tpu_custom_call.1} parent=1 // pred_check_branch
      %38 = sbr.rel (0) target = $region17
    $region16: #{tpu_custom_call.1} parent=1 // pred_region
      %s40 = ssub.s32 2048, 2048
      %41 = vsyncadd [#allocation6], %s40
      %s42 = sshll.u32 [#allocation7], 4
      %s43 = int_to_ptr.vmem [resolvable:$true] %s42
      %48 = dma.hbm_to_vmem [thread:$0]  %s3, 2048, %s43, [#allocation6], 64, 64, 4
    $region17: #{tpu_custom_call.1} parent=1 // pred_fallthru
      _
    // Predicated region
    $region18: #{tpu_custom_call.1} parent=1 // pred_check
      _
    $region19: #{tpu_custom_call.1} parent=1 // pred_check_branch
      %50 = sbr.rel (0) target = $region21
    $region20: #{tpu_custom_call.1} parent=1 // pred_region
      _
    $region21: #{tpu_custom_call.1} parent=1 // pred_fallthru
      _
    // Predicated region
    $region22: #{tpu_custom_call.1} parent=1 // pred_check
      _
    $region23: #{tpu_custom_call.1} parent=1 // pred_check_branch
      %52 = sbr.rel (0) target = $region25
    $region24: #{tpu_custom_call.1} parent=1 // pred_region
      %53 = dma.done [#allocation3], 128
    $region25: #{tpu_custom_call.1} parent=1 // pred_fallthru
      _
    // Predicated region
    $region26: #{tpu_custom_call.1} parent=1 // pred_check
      _
    $region27: #{tpu_custom_call.1} parent=1 // pred_check_branch
      %55 = sbr.rel (0) target = $region29
    $region28: #{tpu_custom_call.1} parent=1 // pred_region
      %56 = dma.done [#allocation6], 2048
    $region29: #{tpu_custom_call.1} parent=1 // pred_fallthru
      _
    // Predicated region
    $region30: #{tpu_custom_call.1} parent=1 // pred_check
      _
    $region31: #{tpu_custom_call.1} parent=1 // pred_check_branch
      %58 = sbr.rel (0) target = $region33
    $region32: #{tpu_custom_call.1} parent=1 // pred_region
      %59 = dma.done [#allocation6], 2048
    $region33: #{tpu_custom_call.1} parent=1 // pred_fallthru
      _
    %v61 = vld [vmem:[#allocation2] sm:$0xff]
    %v62 = vpack.c.bf16 %v61, %v61
    %v63 = vld [vmem:[#allocation5] sm:$0xff]
    %v64 = vld [vmem:[#allocation5 + $0x8] sm:$0xff]
    %v65 = vld [vmem:[#allocation5 + $0x10] sm:$0xff]
    %v66 = vld [vmem:[#allocation5 + $0x18] sm:$0xff]
    %v67 = vld [vmem:[#allocation5 + $0x20] sm:$0xff]
    %v68 = vld [vmem:[#allocation5 + $0x28] sm:$0xff]
    %v69 = vld [vmem:[#allocation5 + $0x30] sm:$0xff]
    %v70 = vld [vmem:[#allocation5 + $0x38] sm:$0xff]
    %v71 = vld [vmem:[#allocation5 + $0x40] sm:$0xff]
    %v72 = vld [vmem:[#allocation5 + $0x48] sm:$0xff]
    %v73 = vld [vmem:[#allocation5 + $0x50] sm:$0xff]
    %v74 = vld [vmem:[#allocation5 + $0x58] sm:$0xff]
    %v75 = vld [vmem:[#allocation5 + $0x60] sm:$0xff]
    %v76 = vld [vmem:[#allocation5 + $0x68] sm:$0xff]
    %v77 = vld [vmem:[#allocation5 + $0x70] sm:$0xff]
    %v78 = vld [vmem:[#allocation5 + $0x78] sm:$0xff]
    %v79 = vld [vmem:[%s2] sm:$0x3]
    %v81 = vlaneseq
    %v82 = vshrl.u32 %v81, 7
    %v83 = vsub.s32 0, %v82
    %v84 = vrot.slane %v79, %v83
    %v85 = vlaneseq
    %v86 = vshrl.u32 %v85, 7
    %v87 = vsub.s32 1, %v86
    %v88 = vrot.slane %v79, %v87
    %v107 = vunpack.c.l.b16 %v63
    %v108 = vunpack.c.h.b16 %v63
    %v109 = vunpack.c.l.b16 %v64
    %v110 = vunpack.c.h.b16 %v64
    %v111 = vunpack.c.l.b16 %v65
    %v112 = vunpack.c.h.b16 %v65
    %v113 = vunpack.c.l.b16 %v66
    %v114 = vunpack.c.h.b16 %v66
    %v115 = vunpack.c.l.b16 %v67
    %v116 = vunpack.c.h.b16 %v67
    %v117 = vunpack.c.l.b16 %v68
    %v118 = vunpack.c.h.b16 %v68
    %v119 = vunpack.c.l.b16 %v69
    %v120 = vunpack.c.h.b16 %v69
    %v121 = vunpack.c.l.b16 %v70
    %v122 = vunpack.c.h.b16 %v70
    %v123 = vunpack.c.l.b16 %v71
    %v124 = vunpack.c.h.b16 %v71
    %v125 = vunpack.c.l.b16 %v72
    %v126 = vunpack.c.h.b16 %v72
    %v127 = vunpack.c.l.b16 %v73
    %v128 = vunpack.c.h.b16 %v73
    %v129 = vunpack.c.l.b16 %v74
    %v130 = vunpack.c.h.b16 %v74
    %v131 = vunpack.c.l.b16 %v75
    %v132 = vunpack.c.h.b16 %v75
    %v133 = vunpack.c.l.b16 %v76
    %v134 = vunpack.c.h.b16 %v76
    %v135 = vunpack.c.l.b16 %v77
    %v136 = vunpack.c.h.b16 %v77
    %v137 = vunpack.c.l.b16 %v78
    %v138 = vunpack.c.h.b16 %v78
    %v139 = vpack.c.b16 %v109, %v107
    %v140 = vpack.c.b16 %v110, %v108
    %v141 = vpack.c.b16 %v113, %v111
    %v142 = vpack.c.b16 %v114, %v112
    %v143 = vpack.c.b16 %v117, %v115
    %v144 = vpack.c.b16 %v118, %v116
    %v145 = vpack.c.b16 %v121, %v119
    %v146 = vpack.c.b16 %v122, %v120
    %v147 = vpack.c.b16 %v125, %v123
    %v148 = vpack.c.b16 %v126, %v124
    %v149 = vpack.c.b16 %v129, %v127
    %v150 = vpack.c.b16 %v130, %v128
    %v151 = vpack.c.b16 %v133, %v131
    %v152 = vpack.c.b16 %v134, %v132
    %v153 = vpack.c.b16 %v137, %v135
    %v154 = vpack.c.b16 %v138, %v136
    %171 = vmatprep.subr.bf16.mxu0 %v140
    %172 = vmatpush1.bf16.msra.mxu0 %v139
    %173 = vmatprep.subr.bf16.mxu0 %v142
    %174 = vmatpush1.bf16.msra.mxu0 %v141
    %175 = vmatprep.subr.bf16.mxu0 %v144
    %176 = vmatpush1.bf16.msra.mxu0 %v143
    %177 = vmatprep.subr.bf16.mxu0 %v146
    %178 = vmatpush1.bf16.msra.mxu0 %v145
    %179 = vmatprep.subr.bf16.mxu0 %v148
    %180 = vmatpush1.bf16.msra.mxu0 %v147
    %181 = vmatprep.subr.bf16.mxu0 %v150
    %182 = vmatpush1.bf16.msra.mxu0 %v149
    %183 = vmatprep.subr.bf16.mxu0 %v152
    %184 = vmatpush1.bf16.msra.mxu0 %v151
    %185 = vmatprep.subr.bf16.mxu0 %v154
    %186 = vmatpush1.bf16.msra.mxu0 %v153
    %187 = vmatprep.subr.bf16.mxu0 0
    %188 = vmatpush1.bf16.msra.mxu0 0
    %189 = vmatprep.subr.bf16.mxu0 0
    %190 = vmatpush1.bf16.msra.mxu0 0
    %191 = vmatprep.subr.bf16.mxu0 0
    %192 = vmatpush1.bf16.msra.mxu0 0
    %193 = vmatprep.subr.bf16.mxu0 0
    %194 = vmatpush1.bf16.msra.mxu0 0
    %195 = vmatprep.subr.bf16.mxu0 0
    %196 = vmatpush1.bf16.msra.mxu0 0
    %197 = vmatprep.subr.bf16.mxu0 0
    %198 = vmatpush1.bf16.msra.mxu0 0
    %199 = vmatprep.subr.bf16.mxu0 0
    %200 = vmatpush1.bf16.msra.mxu0 0
    %201 = vmatprep.subr.bf16.mxu0 0
    %202 = vmatpush1.bf16.msra.mxu0 0
    %203 = vmatprep.mubr.bf16.mxu0 0
    %204 = vmatmul.mubr.bf16.gmra.mrb[0].mxu0 %v62
    %v205 = vpop.f32.mrb[0].mxu0
    %v206 = vadd.f32 %v84, %v205
    %v207 = vpop.f32.mrb[0].mxu0
    %v208 = vadd.f32 %v88, %v207
    %v209 = vpop.f32.mrb[0].mxu0
    %v210 = vpop.f32.mrb[0].mxu0
    %211 = vdwg.mxu0
    %v212 = vmax.f32 %v206, 0.0
    %v213 = vmax.f32 %v208, 0.0
    %v214 = vpack.c.bf16 %v212, %v212
    %v215 = vpack.c.bf16 %v213, %v213
    %v216 = vld [vmem:[#allocation7] sm:$0xf]
    %v217 = vld [vmem:[#allocation7 + $0x4] sm:$0xf]
    %v218 = vld [vmem:[#allocation7 + $0x8] sm:$0xf]
    %v219 = vld [vmem:[#allocation7 + $0xc] sm:$0xf]
    %v220 = vld [vmem:[#allocation7 + $0x10] sm:$0xf]
    %v221 = vld [vmem:[#allocation7 + $0x14] sm:$0xf]
    %v222 = vld [vmem:[#allocation7 + $0x18] sm:$0xf]
    %v223 = vld [vmem:[#allocation7 + $0x1c] sm:$0xf]
    %v224 = vld [vmem:[#allocation7 + $0x20] sm:$0xf]
    %v225 = vld [vmem:[#allocation7 + $0x24] sm:$0xf]
    %v226 = vld [vmem:[#allocation7 + $0x28] sm:$0xf]
    %v227 = vld [vmem:[#allocation7 + $0x2c] sm:$0xf]
    %v228 = vld [vmem:[#allocation7 + $0x30] sm:$0xf]
    %v229 = vld [vmem:[#allocation7 + $0x34] sm:$0xf]
    %v230 = vld [vmem:[#allocation7 + $0x38] sm:$0xf]
    %v231 = vld [vmem:[#allocation7 + $0x3c] sm:$0xf]
    %v232 = vld [vmem:[#allocation7 + $0x40] sm:$0xf]
    %v233 = vld [vmem:[#allocation7 + $0x44] sm:$0xf]
    %v234 = vld [vmem:[#allocation7 + $0x48] sm:$0xf]
    %v235 = vld [vmem:[#allocation7 + $0x4c] sm:$0xf]
    %v236 = vld [vmem:[#allocation7 + $0x50] sm:$0xf]
    %v237 = vld [vmem:[#allocation7 + $0x54] sm:$0xf]
    %v238 = vld [vmem:[#allocation7 + $0x58] sm:$0xf]
    %v239 = vld [vmem:[#allocation7 + $0x5c] sm:$0xf]
    %v240 = vld [vmem:[#allocation7 + $0x60] sm:$0xf]
    %v241 = vld [vmem:[#allocation7 + $0x64] sm:$0xf]
    %v242 = vld [vmem:[#allocation7 + $0x68] sm:$0xf]
    %v243 = vld [vmem:[#allocation7 + $0x6c] sm:$0xf]
    %v244 = vld [vmem:[#allocation7 + $0x70] sm:$0xf]
    %v245 = vld [vmem:[#allocation7 + $0x74] sm:$0xf]
    %v246 = vld [vmem:[#allocation7 + $0x78] sm:$0xf]
    %v247 = vld [vmem:[#allocation7 + $0x7c] sm:$0xf]
    %v280 = vunpack.c.l.b16 %v216
    %v281 = vunpack.c.l.b16 %v217
    %v282 = vunpack.c.l.b16 %v218
    %v283 = vunpack.c.l.b16 %v219
    %v284 = vunpack.c.l.b16 %v220
    %v285 = vunpack.c.l.b16 %v221
    %v286 = vunpack.c.l.b16 %v222
    %v287 = vunpack.c.l.b16 %v223
    %v288 = vunpack.c.l.b16 %v224
    %v289 = vunpack.c.l.b16 %v225
    %v290 = vunpack.c.l.b16 %v226
    %v291 = vunpack.c.l.b16 %v227
    %v292 = vunpack.c.l.b16 %v228
    %v293 = vunpack.c.l.b16 %v229
    %v294 = vunpack.c.l.b16 %v230
    %v295 = vunpack.c.l.b16 %v231
    %v296 = vunpack.c.l.b16 %v232
    %v297 = vunpack.c.l.b16 %v233
    %v298 = vunpack.c.l.b16 %v234
    %v299 = vunpack.c.l.b16 %v235
    %v300 = vunpack.c.l.b16 %v236
    %v301 = vunpack.c.l.b16 %v237
    %v302 = vunpack.c.l.b16 %v238
    %v303 = vunpack.c.l.b16 %v239
    %v304 = vunpack.c.l.b16 %v240
    %v305 = vunpack.c.l.b16 %v241
    %v306 = vunpack.c.l.b16 %v242
    %v307 = vunpack.c.l.b16 %v243
    %v308 = vunpack.c.l.b16 %v244
    %v309 = vunpack.c.l.b16 %v245
    %v310 = vunpack.c.l.b16 %v246
    %v311 = vunpack.c.l.b16 %v247
    %v312 = vpack.c.b16 %v281, %v280
    %v313 = vpack.c.b16 %v283, %v282
    %v314 = vpack.c.b16 %v285, %v284
    %v315 = vpack.c.b16 %v287, %v286
    %v316 = vpack.c.b16 %v289, %v288
    %v317 = vpack.c.b16 %v291, %v290
    %v318 = vpack.c.b16 %v293, %v292
    %v319 = vpack.c.b16 %v295, %v294
    %v320 = vpack.c.b16 %v297, %v296
    %v321 = vpack.c.b16 %v299, %v298
    %v322 = vpack.c.b16 %v301, %v300
    %v323 = vpack.c.b16 %v303, %v302
    %v324 = vpack.c.b16 %v305, %v304
    %v325 = vpack.c.b16 %v307, %v306
    %v326 = vpack.c.b16 %v309, %v308
    %v327 = vpack.c.b16 %v311, %v310
    %344 = vmatprep.subr.bf16.mxu0 0
    %345 = vmatpush1.bf16.msra.mxu0 %v312
    %346 = vmatprep.subr.bf16.mxu0 0
    %347 = vmatpush1.bf16.msra.mxu0 %v313
    %348 = vmatprep.subr.bf16.mxu0 0
    %349 = vmatpush1.bf16.msra.mxu0 %v314
    %350 = vmatprep.subr.bf16.mxu0 0
    %351 = vmatpush1.bf16.msra.mxu0 %v315
    %352 = vmatprep.subr.bf16.mxu0 0
    %353 = vmatpush1.bf16.msra.mxu0 %v316
    %354 = vmatprep.subr.bf16.mxu0 0
    %355 = vmatpush1.bf16.msra.mxu0 %v317
    %356 = vmatprep.subr.bf16.mxu0 0
    %357 = vmatpush1.bf16.msra.mxu0 %v318
    %358 = vmatprep.subr.bf16.mxu0 0
    %359 = vmatpush1.bf16.msra.mxu0 %v319
    %360 = vmatprep.subr.bf16.mxu0 0
    %361 = vmatpush1.bf16.msra.mxu0 %v320
    %362 = vmatprep.subr.bf16.mxu0 0
    %363 = vmatpush1.bf16.msra.mxu0 %v321
    %364 = vmatprep.subr.bf16.mxu0 0
    %365 = vmatpush1.bf16.msra.mxu0 %v322
    %366 = vmatprep.subr.bf16.mxu0 0
    %367 = vmatpush1.bf16.msra.mxu0 %v323
    %368 = vmatprep.subr.bf16.mxu0 0
    %369 = vmatpush1.bf16.msra.mxu0 %v324
    %370 = vmatprep.subr.bf16.mxu0 0
    %371 = vmatpush1.bf16.msra.mxu0 %v325
    %372 = vmatprep.subr.bf16.mxu0 0
    %373 = vmatpush1.bf16.msra.mxu0 %v326
    %374 = vmatprep.subr.bf16.mxu0 0
    %375 = vmatpush1.bf16.msra.mxu0 %v327
    %376 = vmatprep.mubr.bf16.mxu0 %v215
    %377 = vmatmul.mubr.bf16.gmra.mrb[0].mxu0 %v214
    %v378 = vpop.f32.mrb[0].mxu0
    %v379 = vadd.f32 0.0, %v378
    %v380 = vpop.f32.mrb[0].mxu0
    %v381 = vpop.f32.mrb[0].mxu0
    %v382 = vpop.f32.mrb[0].mxu0
    %383 = vdwg.mxu0
    %v384 = vadd.f32 %v61, %v379
    %v385 = vld [vmem:[%s4] sm:$0x1]
    %v387 = vlaneseq
    %v388 = vshrl.u32 %v387, 7
    %v389 = vsub.s32 0, %v388
    %v390 = vrot.slane %v385, %v389
    %v392 = vadd.f32 %v384, %v390
    %393 = vst [vmem:[#allocation8] sm:$0xff] %v392
    // Predicated region
    $region34: #{tpu_custom_call.1} parent=1 // pred_check
      _
    $region35: #{tpu_custom_call.1} parent=1 // pred_check_branch
      %395 = sbr.rel (0) target = $region37
    $region36: #{tpu_custom_call.1} parent=1 // pred_region
      %s397 = ssub.s32 128, 128
      %398 = vsyncadd [#allocation4], %s397
      %s400 = sshll.u32 [#allocation8], 4
      %s401 = int_to_ptr.vmem [resolvable:$true] %s400
      %403 = dma.vmem_to_hbm [thread:$0]  %s401, 128, %s5, [#allocation4]
    $region37: #{tpu_custom_call.1} parent=1 // pred_fallthru
      _
    // Predicated region
    $region38: #{tpu_custom_call.1} parent=1 // pred_check
      _
    $region39: #{tpu_custom_call.1} parent=1 // pred_check_branch
      %405 = sbr.rel (0) target = $region41
    $region40: #{tpu_custom_call.1} parent=1 // pred_region
      %406 = dma.done [#allocation4], 128
    $region41: #{tpu_custom_call.1} parent=1 // pred_fallthru
      _
    %407 = vsyncpa [#allocation3], 1
    %408 = vsyncpa [#allocation6], 1
    %409 = vsyncpa [#allocation4], 1

</llo_original>
